<compile_context>
chip_gen: v6e
topology: v6e:2x2x1
jax: 0.10.0
libtpu: 0.0.40
codegen_flags: <defaults>
</compile_context>

<pallas_src>
import functools

import jax
import jax.numpy as jnp
from jax.experimental import pallas as pl
from jax.experimental.pallas import tpu as pltpu

LANES = 128
MAX_ROW_BLOCK = 8192     # rows of 128 lanes per grid step (4 MiB f32 per input)
SUB_ROWS = 512           # rows per in-kernel sub-chunk (bounds live temporaries)
ACC_ROWS = 32            # accumulator sublanes -> 4 independent VALU add chains
NUM_SPLITS = 2           # leading "parallel" axis (megacore / dual-TC sharding)


def _contrib(p, t, beta, binary_targets):
    """Per-element loss: t*(-beta)*log(p) - (1-t)*(1-beta)*log(1-p)."""
    if binary_targets:
        # Single log per element (valid only when t is exactly 0 or 1).
        pick = t > jnp.float32(0.5)
        q = jnp.where(pick, p, 1.0 - p)
        w = jnp.where(pick, jnp.float32(-beta), jnp.float32(-(1.0 - beta)))
        return w * jnp.log(q)
    log1 = jnp.log(p)
    log2 = jnp.log(1.0 - p)
    b_term = (1.0 - beta) * log2
    # == t*(-beta)*log1 - (1-t)*(1-beta)*log2, with one fewer VALU op.
    return t * ((-beta) * log1 + b_term) - b_term


def _accum_rows(p_ref, t_ref, acc_ref, n_rows, *, sub_rows, beta, binary_targets):
    """Accumulate rows [0, n_rows) of the current tile into acc_ref (n_rows static)."""

    def do_chunk(start, m):          # m: static multiple of 8
        p = p_ref[pl.ds(start, m), :].astype(jnp.float32)
        t = t_ref[pl.ds(start, m), :].astype(jnp.float32)
        contrib = _contrib(p, t, beta, binary_targets)
        if m % ACC_ROWS == 0:
            acc_ref[...] += contrib.reshape(m // ACC_ROWS, ACC_ROWS, LANES).sum(axis=0)
        else:
            acc_ref[0:8, :] += contrib.reshape(m // 8, 8, LANES).sum(axis=0)

    n_full = n_rows // sub_rows
    rem = n_rows % sub_rows
    if n_full == 1 and rem == 0:
        do_chunk(0, sub_rows)
    elif n_full > 0:
        @pl.loop(0, n_full)
        def _(s):
            do_chunk(pl.multiple_of(s * sub_rows, sub_rows), sub_rows)
    if rem:
        do_chunk(n_full * sub_rows, rem)


def _mll_kernel(p_ref, t_ref, o_ref, acc_ref, *, beta, binary_targets, row_block,
                n_blocks, blocks_per_split, num_splits, last_valid, sub_rows):
    c = pl.program_id(0)      # parallel split (per-core with megacore sharding)
    i = pl.program_id(1)      # sequential reduction steps within the split

    @pl.when(i == 0)
    def _():
        acc_ref[...] = jnp.zeros_like(acc_ref)

    def accumulate(n_rows):
        _accum_rows(p_ref, t_ref, acc_ref, n_rows,
                    sub_rows=sub_rows, beta=beta, binary_targets=binary_targets)

    has_partial = last_valid < row_block                   # static Python bool
    has_oob = blocks_per_split * num_splits > n_blocks     # static Python bool

    if not has_partial and not has_oob:
        accumulate(row_block)                # hot path: no branches, no masks
    else:
        b = c * blocks_per_split + i         # global block id
        n_full_blocks = n_blocks - 1 if has_partial else n_blocks

        @pl.when(b < n_full_blocks)
        def _():
            accumulate(row_block)

        if has_partial:
            @pl.when(b == n_blocks - 1)
            def _():
                accumulate(last_valid)       # static row count, no mask
        # b >= n_blocks: clamped duplicate fetch, contributes nothing.

    @pl.when(i == pl.num_programs(1) - 1)
    def _():
        o_ref[0] = acc_ref[...]


def _loss_sum_jnp(p, t, beta):
    p = p.astype(jnp.float32)
    t = t.astype(jnp.float32)
    b_term = (1.0 - beta) * jnp.log(1.0 - p)
    return jnp.sum(t * ((-beta) * jnp.log(p) + b_term) - b_term)


def multi_ll_loss(predictions, targets, beta=0.5, *, binary_targets=False,
                  max_row_block=MAX_ROW_BLOCK, sub_rows=SUB_ROWS):
    """Pallas implementation of MultiLLFunction.forward.

    predictions, targets: [batch, num_classes, height, width] (any float dtype).
    Returns a float32 scalar:
        sum(targets * (-beta) * log(p) - (1 - targets) * (1 - beta) * log(1 - p)).
    Set binary_targets=True only when targets are exactly {0, 1} (single-log path).
    """
    assert predictions.shape == targets.shape
    total = predictions.size
    beta = float(beta)

    p_flat = predictions.reshape(-1)
    t_flat = targets.reshape(-1)

    rows = (total // (8 * LANES)) * 8          # kernel rows (multiple of 8)
    main = rows * LANES
    tail = total - main                        # < 1024 leftover elements

    out = jnp.float32(0.0)
    if tail:
        # Rare ragged case: tiny remainder reduced by plain jnp.
        # TODO(synk): the prefix slice below may cost one extra HBM pass; common
        # NCHW shapes (element count a multiple of 1024) take the zero-copy path.
        out = out + _loss_sum_jnp(p_flat[main:], t_flat[main:], beta)
    if rows == 0:
        return out

    p2 = (p_flat if tail == 0 else p_flat[:main]).reshape(rows, LANES)
    t2 = (t_flat if tail == 0 else t_flat[:main]).reshape(rows, LANES)

    row_block = max(8, (min(max_row_block, rows) // 8) * 8)
    n_blocks = -(-rows // row_block)
    num_splits = NUM_SPLITS if n_blocks >= NUM_SPLITS else 1
    blocks_per_split = -(-n_blocks // num_splits)
    last_valid = rows - (n_blocks - 1) * row_block           # multiple of 8
    sub = max(8, (min(sub_rows, row_block) // 8) * 8)

    in_spec = pl.BlockSpec(
        (row_block, LANES),
        lambda c, i: (jnp.minimum(c * blocks_per_split + i, n_blocks - 1), 0))
    out_spec = pl.BlockSpec((1, ACC_ROWS, LANES), lambda c, i: (c, 0, 0))

    partial = pl.pallas_call(
        functools.partial(
            _mll_kernel, beta=beta, binary_targets=bool(binary_targets),
            row_block=row_block, n_blocks=n_blocks,
            blocks_per_split=blocks_per_split, num_splits=num_splits,
            last_valid=last_valid, sub_rows=sub),
        out_shape=jax.ShapeDtypeStruct((num_splits, ACC_ROWS, LANES), jnp.float32),
        grid_spec=pltpu.PrefetchScalarGridSpec(
            num_scalar_prefetch=0,
            grid=(num_splits, blocks_per_split),
            in_specs=[in_spec, in_spec],
            out_specs=out_spec,
            scratch_shapes=[pltpu.VMEM((ACC_ROWS, LANES), jnp.float32)],
        ),
        compiler_params=pltpu.CompilerParams(
            dimension_semantics=("parallel", "arbitrary"),
            vmem_limit_bytes=32 * 1024 * 1024,
        ),
    )(p2, t2)

    # Tiny final reduce (num_splits * 32 * 128 floats) done by XLA.
    return out + jnp.sum(partial)


def _reference(predictions, targets, beta=0.5):
    p = predictions.astype(jnp.float32)
    t = targets.astype(jnp.float32)
    term1 = t * (-beta) * jnp.log(p)
    term2 = (1.0 - t) * (1.0 - beta) * jnp.log(1.0 - p)
    return jnp.sum(term1 - term2)


if __name__ == "__main__":
    key = jax.random.PRNGKey(0)
    kp, kt = jax.random.split(key)

    # Primary shape from the module spec: [batch, num_classes, height, width].
    B, C, H, W = 2, 4, 16, 16
    predictions = jax.random.uniform(kp, (B, C, H, W), jnp.float32,
                                     minval=0.05, maxval=0.95)
    targets = (jax.random.uniform(kt, (B, C, H, W)) > 0.5).astype(jnp.float32)

    loss = jax.block_until_ready(multi_ll_loss(predictions, targets, beta=0.5))
    ref = jax.block_until_ready(_reference(predictions, targets, beta=0.5))
    assert jnp.allclose(loss, ref, rtol=1e-5, atol=1e-3), (loss, ref)

    # Binary-target fast path (single log) on the same inputs.
    loss_b = jax.block_until_ready(
        multi_ll_loss(predictions, targets, beta=0.5, binary_targets=True))
    assert jnp.allclose(loss_b, ref, rtol=1e-5, atol=1e-3), (loss_b, ref)

    # Coverage: multi-block grid with a partial edge tile, a clamped OOB block
    # and the in-kernel sub-chunk loop (tiny tile overrides keep shapes small).
    p2 = jax.random.uniform(kp, (1, 5, 32, 32), jnp.float32, minval=0.05, maxval=0.95)
    t2 = (jax.random.uniform(kt, (1, 5, 32, 32)) > 0.5).astype(jnp.float32)
    loss2 = jax.block_until_ready(
        multi_ll_loss(p2, t2, beta=0.25, max_row_block=16, sub_rows=8))
    ref2 = jax.block_until_ready(_reference(p2, t2, beta=0.25))
    assert jnp.allclose(loss2, ref2, rtol=1e-5, atol=1e-3), (loss2, ref2)

    # Coverage: ragged element count (plain-jnp tail path).
    p3 = jax.random.uniform(kp, (2, 3, 16, 21), jnp.float32, minval=0.05, maxval=0.95)
    t3 = (jax.random.uniform(kt, (2, 3, 16, 21)) > 0.5).astype(jnp.float32)
    loss3 = jax.block_until_ready(multi_ll_loss(p3, t3, beta=0.5))
    ref3 = jax.block_until_ready(_reference(p3, t3, beta=0.5))
    assert jnp.allclose(loss3, ref3, rtol=1e-5, atol=1e-3), (loss3, ref3)

    print("KERNEL_OK")
</pallas_src>

<mosaic_0001>
module attributes {stable_mosaic.version = 11 : i64} {
  func.func @_mll_kernel(%arg0: i32, %arg1: i32, %arg2: memref<16x128xf32, #tpu.memory_space<vmem>>, %arg3: memref<16x128xf32, #tpu.memory_space<vmem>>, %arg4: memref<1x32x128xf32, #tpu.memory_space<vmem>>, %arg5: memref<32x128xf32, #tpu.memory_space<vmem>>) attributes {dimension_semantics = [#tpu.dimension_semantics<parallel>, #tpu.dimension_semantics<arbitrary>], iteration_bounds = array<i64: 1, 1>, scalar_prefetch = 0 : i64, scratch_operands = 1 : i64, tpu.core_type = #tpu.core_type<tc>, window_params = [{transform_indices = @transform_0, window_bounds = array<i64: 16, 128>}, {transform_indices = @transform_1, window_bounds = array<i64: 16, 128>}, {transform_indices = @transform_2, window_bounds = array<i64: 1, 32, 128>}]} {
    %c0_i32 = arith.constant 0 : i32
    %0 = arith.cmpi eq, %arg1, %c0_i32 : i32
    %1 = arith.extui %0 : i1 to i32
    %c0_i32_0 = arith.constant 0 : i32
    %2 = arith.cmpi ne, %1, %c0_i32_0 : i32
    scf.if %2 {
      %cst_13 = arith.constant 0.000000e+00 : f32
      %24 = vector.broadcast %cst_13 : f32 to vector<32x128xf32>
      %c0_14 = arith.constant 0 : index
      %c0_15 = arith.constant 0 : index
      %25 = vector.load %arg5[%c0_14, %c0_15] : memref<32x128xf32, #tpu.memory_space<vmem>>, vector<32x128xf32>
      tpu.vector_store %arg5[%c0_14, %c0_15], %24 {strides = array<i32>} : memref<32x128xf32, #tpu.memory_space<vmem>>, vector<32x128xf32>,
    } else {
    }
    %c0 = arith.constant 0 : index
    %c0_1 = arith.constant 0 : index
    %3 = vector.load %arg2[%c0, %c0_1] : memref<16x128xf32, #tpu.memory_space<vmem>>, vector<16x128xf32>
    %c0_2 = arith.constant 0 : index
    %c0_3 = arith.constant 0 : index
    %4 = vector.load %arg3[%c0_2, %c0_3] : memref<16x128xf32, #tpu.memory_space<vmem>>, vector<16x128xf32>
    %5 = math.log %3 : vector<16x128xf32>
    %cst = arith.constant 1.000000e+00 : f32
    %6 = vector.broadcast %cst : f32 to vector<16x128xf32>
    %7 = arith.subf %6, %3 : vector<16x128xf32>
    %8 = math.log %7 : vector<16x128xf32>
    %cst_4 = arith.constant 5.000000e-01 : f32
    %9 = vector.broadcast %cst_4 : f32 to vector<16x128xf32>
    %10 = arith.mulf %9, %8 : vector<16x128xf32>
    %cst_5 = arith.constant -5.000000e-01 : f32
    %11 = vector.broadcast %cst_5 : f32 to vector<16x128xf32>
    %12 = arith.mulf %11, %5 : vector<16x128xf32>
    %13 = arith.addf %12, %10 : vector<16x128xf32>
    %14 = arith.mulf %4, %13 : vector<16x128xf32>
    %15 = arith.subf %14, %10 : vector<16x128xf32>
    %c0_6 = arith.constant 0 : index
    %c0_7 = arith.constant 0 : index
    %16 = vector.load %arg5[%c0_6, %c0_7] : memref<32x128xf32, #tpu.memory_space<vmem>>, vector<8x128xf32>
    %17 = vector.shape_cast %15 : vector<16x128xf32> to vector<2x8x128xf32>
    %cst_8 = arith.constant dense<0.000000e+00> : vector<8x128xf32>
    %18 = vector.multi_reduction <add>, %17, %cst_8 [0] : vector<2x8x128xf32> to vector<8x128xf32>
    %19 = arith.addf %16, %18 : vector<8x128xf32>
    %c0_9 = arith.constant 0 : index
    %c0_10 = arith.constant 0 : index
    %20 = vector.load %arg5[%c0_9, %c0_10] : memref<32x128xf32, #tpu.memory_space<vmem>>, vector<8x128xf32>
    tpu.vector_store %arg5[%c0_9, %c0_10], %19 {strides = array<i32>} : memref<32x128xf32, #tpu.memory_space<vmem>>, vector<8x128xf32>,
    %c0_i32_11 = arith.constant 0 : i32
    %21 = arith.cmpi eq, %arg1, %c0_i32_11 : i32
    %22 = arith.extui %21 : i1 to i32
    %c0_i32_12 = arith.constant 0 : i32
    %23 = arith.cmpi ne, %22, %c0_i32_12 : i32
    scf.if %23 {
      %c0_13 = arith.constant 0 : index
      %c0_14 = arith.constant 0 : index
      %24 = vector.load %arg5[%c0_13, %c0_14] : memref<32x128xf32, #tpu.memory_space<vmem>>, vector<32x128xf32>
      %c0_15 = arith.constant 0 : index
      %c0_16 = arith.constant 0 : index
      %c0_17 = arith.constant 0 : index
      %25 = vector.load %arg4[%c0_15, %c0_16, %c0_17] : memref<1x32x128xf32, #tpu.memory_space<vmem>>, vector<1x32x128xf32>
      %26 = vector.shape_cast %25 : vector<1x32x128xf32> to vector<32x128xf32>
      %27 = vector.shape_cast %24 : vector<32x128xf32> to vector<1x32x128xf32>
      tpu.vector_store %arg4[%c0_15, %c0_16, %c0_17], %27 {strides = array<i32>} : memref<1x32x128xf32, #tpu.memory_space<vmem>>, vector<1x32x128xf32>,
    } else {
    }
    return
  }
  func.func @transform_0(%arg0: i32, %arg1: i32) -> (i32, i32) {
    %c1_i32 = arith.constant 1 : i32
    %0 = arith.muli %arg0, %c1_i32 : i32
    %1 = arith.addi %0, %arg1 : i32
    %c0_i32 = arith.constant 0 : i32
    %2 = arith.minsi %1, %c0_i32 : i32
    %c0_i32_0 = arith.constant 0 : i32
    %c0_i32_1 = arith.constant 0 : i32
    return %2, %c0_i32_0 : i32, i32
  }
  func.func @transform_1(%arg0: i32, %arg1: i32) -> (i32, i32) {
    %c1_i32 = arith.constant 1 : i32
    %0 = arith.muli %arg0, %c1_i32 : i32
    %1 = arith.addi %0, %arg1 : i32
    %c0_i32 = arith.constant 0 : i32
    %2 = arith.minsi %1, %c0_i32 : i32
    %c0_i32_0 = arith.constant 0 : i32
    %c0_i32_1 = arith.constant 0 : i32
    return %2, %c0_i32_0 : i32, i32
  }
  func.func @transform_2(%arg0: i32, %arg1: i32) -> (i32, i32, i32) {
    %c0_i32 = arith.constant 0 : i32
    %c0_i32_0 = arith.constant 0 : i32
    %c0_i32_1 = arith.constant 0 : i32
    return %arg0, %c0_i32, %c0_i32_0 : i32, i32, i32
  }
}

</mosaic_0001>

<llo_original>
// kernel: tpu_custom_call.1
$region0: #{tpu_custom_call.1}
  #allocation0 [shape = 'u32[]', space=smem, size = 0x4, offset = 0x4, fixed_abs, tag = 'smem constant byte address 0x4 - core index']
  #allocation1 [shape = 'u32[144,128]{1,0:T(1,128)}', space=vmem, size = 0x12000, scoped, tag = 'internal scratch']
  #allocation2 [shape = 'f32[32,128]{1,0:T(8,128)}', space=vmem, size = 0x4000, scoped, tag = 'scratch operand']
  %s0 = inlined_call_operand.hbm [shape: f32[16,128], index: 0, kind: input, shape index: {}]
  %s1 = inlined_call_operand.hbm [shape: f32[16,128], index: 1, kind: input, shape index: {}]
  %s2 = inlined_call_operand.hbm [shape: f32[1,32,128], index: 2, kind: output, shape index: {}]
  %s3 = sld [smem:[#allocation0]]
  $region34: #{tpu_custom_call.1} parent=0
    _
  %s5 = ssub.s32 1, %s3
  %s6 = scalar_select 0, %s5, %s3
  $region1: #{tpu_custom_call.1} parent=0
    #allocation3 [shape = 'u8[8192]{0}', space=vmem, size = 0x2000, scoped, tag = 'input window, operand 0, single buffered']
    #allocation4 [shape = 's32[1]{0}', space=sflag, size = 0x4, scoped, tag = 'scoped memory for tpu_custom_call.1']
    #allocation5 [shape = 's32[1]{0}', space=sflag, size = 0x4, scoped, tag = 'scoped memory for tpu_custom_call.1']
    #allocation6 [shape = 'u8[8192]{0}', space=vmem, size = 0x2000, scoped, tag = 'input window, operand 1, single buffered']
    #allocation7 [shape = 's32[1]{0}', space=sflag, size = 0x4, scoped, tag = 'scoped memory for tpu_custom_call.1']
    #allocation8 [shape = 'u8[16384]{0}', space=vmem, size = 0x4000, scoped, tag = 'output window, operand 0, single buffered']
    %7 = vsyncpa [#allocation4], 0
    %8 = vsyncpa [#allocation7], 0
    %9 = vsyncpa [#allocation5], 0
    // Predicated region
    $region2: #{tpu_custom_call.1} parent=1 // pred_check
      _
    $region3: #{tpu_custom_call.1} parent=1 // pred_check_branch
      %11 = sbr.rel (0) target = $region5
    $region4: #{tpu_custom_call.1} parent=1 // pred_region
      %s12 = sadd.s32 0, 0
      %p13 = scmp.lt.s32.totalorder %s12, 0
      %s14 = scalar_select %p13, %s12, 0
      %s15 = smul.u32 2, %s14
      %s17 = ssub.s32 256, 256
      %18 = vsyncadd [#allocation4], %s17
      %s19 = smul.addr %s15, 128
      %s20 = scalar_lea.hbm %s0, %s19
      %s21 = sshll.u32 [#allocation3], 4
      %s22 = int_to_ptr.vmem [resolvable:$true] %s21
      %27 = dma.hbm_to_vmem [thread:$0]  %s20, 256, %s22, [#allocation4], 128, 128, 8
    $region5: #{tpu_custom_call.1} parent=1 // pred_fallthru
      _
    // Predicated region
    $region6: #{tpu_custom_call.1} parent=1 // pred_check
      _
    $region7: #{tpu_custom_call.1} parent=1 // pred_check_branch
      %29 = sbr.rel (0) target = $region9
    $region8: #{tpu_custom_call.1} parent=1 // pred_region
      %s30 = sadd.s32 0, 0
      %p31 = scmp.lt.s32.totalorder %s30, 0
      %s32 = scalar_select %p31, %s30, 0
      %s33 = smul.u32 2, %s32
      %s35 = ssub.s32 256, 256
      %36 = vsyncadd [#allocation7], %s35
      %s37 = smul.addr %s33, 128
      %s38 = scalar_lea.hbm %s1, %s37
      %s39 = sshll.u32 [#allocation6], 4
      %s40 = int_to_ptr.vmem [resolvable:$true] %s39
      %45 = dma.hbm_to_vmem [thread:$0]  %s38, 256, %s40, [#allocation7], 128, 128, 8
    $region9: #{tpu_custom_call.1} parent=1 // pred_fallthru
      _
    // Predicated region
    $region10: #{tpu_custom_call.1} parent=1 // pred_check
      _
    $region11: #{tpu_custom_call.1} parent=1 // pred_check_branch
      %47 = sbr.rel (0) target = $region13
    $region12: #{tpu_custom_call.1} parent=1 // pred_region
      %48 = dma.done [#allocation4], 256
    $region13: #{tpu_custom_call.1} parent=1 // pred_fallthru
      _
    // Predicated region
    $region14: #{tpu_custom_call.1} parent=1 // pred_check
      _
    $region15: #{tpu_custom_call.1} parent=1 // pred_check_branch
      %50 = sbr.rel (0) target = $region17
    $region16: #{tpu_custom_call.1} parent=1 // pred_region
      %51 = dma.done [#allocation7], 256
    $region17: #{tpu_custom_call.1} parent=1 // pred_fallthru
      _
    %s52 = sadd.s32 0, 0
    %p53 = scmp.lt.s32.totalorder %s52, 0
    %s54 = scalar_select %p53, %s52, 0
    %s55 = smul.u32 2, %s54
    %s56 = sadd.s32 0, 0
    %p57 = scmp.lt.s32.totalorder %s56, 0
    %s58 = scalar_select %p57, %s56, 0
    %s59 = smul.u32 2, %s58
    %p60 = scmp.eq.s32.totalorder 0, 0
    // Predicated region
    $region18: #{tpu_custom_call.1} parent=1 // pred_check
      %p61 = pneg %p60
    $region19: #{tpu_custom_call.1} parent=1 // pred_check_branch
      %63 = sbr.rel (%p61) target = $region21
    $region20: #{tpu_custom_call.1} parent=1 // pred_region
      %64 = vst [vmem:[#allocation2] sm:$0xff] 0.0
      %65 = vst [vmem:[#allocation2 + $0x8] sm:$0xff] 0.0
      %66 = vst [vmem:[#allocation2 + $0x10] sm:$0xff] 0.0
      %67 = vst [vmem:[#allocation2 + $0x18] sm:$0xff] 0.0
    $region21: #{tpu_custom_call.1} parent=1 // pred_fallthru
      _
    %v68 = vld [vmem:[#allocation3] sm:$0xff]
    %v69 = vld [vmem:[#allocation3 + $0x8] sm:$0xff]
    %v70 = vld [vmem:[#allocation6] sm:$0xff]
    %v71 = vld [vmem:[#allocation6 + $0x8] sm:$0xff]
    %v72 = vlog2.pop %v68
    %v73 = vmul.f32 %v72, 0.6931472
    %v74 = vlog2.pop %v69
    %v75 = vmul.f32 %v74, 0.6931472
    %v76 = vsub.f32 1.0, %v68
    %v77 = vsub.f32 1.0, %v69
    %v78 = vlog2.pop %v76
    %v79 = vmul.f32 %v78, 0.6931472
    %v80 = vlog2.pop %v77
    %v81 = vmul.f32 %v80, 0.6931472
    %v82 = vmul.f32 %v79, 0.5
    %v83 = vmul.f32 %v81, 0.5
    %v84 = vmul.f32 %v73, -0.5
    %v85 = vmul.f32 %v75, -0.5
    %v86 = vadd.f32 %v84, %v82
    %v87 = vadd.f32 %v85, %v83
    %v88 = vmul.f32 %v70, %v86
    %v89 = vmul.f32 %v71, %v87
    %v90 = vsub.f32 %v88, %v82
    %v91 = vsub.f32 %v89, %v83
    %v92 = vld [vmem:[#allocation2] sm:$0xff]
    %v93 = vadd.f32 %v90, %v91
    %v94 = vadd.f32 %v92, %v93
    %95 = vst [vmem:[#allocation2] sm:$0xff] %v94
    // Predicated region
    $region22: #{tpu_custom_call.1} parent=1 // pred_check
      %p96 = pneg %p60
    $region23: #{tpu_custom_call.1} parent=1 // pred_check_branch
      %98 = sbr.rel (%p96) target = $region25
    $region24: #{tpu_custom_call.1} parent=1 // pred_region
      %v99 = vld [vmem:[#allocation2] sm:$0xff]
      %v100 = vld [vmem:[#allocation2 + $0x8] sm:$0xff]
      %v101 = vld [vmem:[#allocation2 + $0x10] sm:$0xff]
      %v102 = vld [vmem:[#allocation2 + $0x18] sm:$0xff]
      %103 = vst [vmem:[#allocation8] sm:$0xff] %v99
      %104 = vst [vmem:[#allocation8 + $0x8] sm:$0xff] %v100
      %105 = vst [vmem:[#allocation8 + $0x10] sm:$0xff] %v101
      %106 = vst [vmem:[#allocation8 + $0x18] sm:$0xff] %v102
    $region25: #{tpu_custom_call.1} parent=1 // pred_fallthru
      _
    // Predicated region
    $region26: #{tpu_custom_call.1} parent=1 // pred_check
      _
    $region27: #{tpu_custom_call.1} parent=1 // pred_check_branch
      %108 = sbr.rel (0) target = $region29
    $region28: #{tpu_custom_call.1} parent=1 // pred_region
      %s110 = ssub.s32 512, 512
      %111 = vsyncadd [#allocation5], %s110
      %s112 = sshll.u32 [#allocation8], 4
      %s113 = int_to_ptr.vmem [resolvable:$true] %s112
      %118 = dma.vmem_to_hbm [thread:$0]  %s113, 512, %s2, [#allocation5], 128, 128, 8
    $region29: #{tpu_custom_call.1} parent=1 // pred_fallthru
      _
    // Predicated region
    $region30: #{tpu_custom_call.1} parent=1 // pred_check
      _
    $region31: #{tpu_custom_call.1} parent=1 // pred_check_branch
      %120 = sbr.rel (0) target = $region33
    $region32: #{tpu_custom_call.1} parent=1 // pred_region
      %121 = dma.done [#allocation5], 512
    $region33: #{tpu_custom_call.1} parent=1 // pred_fallthru
      _
    %122 = vsyncpa [#allocation4], 1
    %123 = vsyncpa [#allocation7], 1
    %124 = vsyncpa [#allocation5], 1

</llo_original>
